<compile_context>
chip_gen: v6e
topology: v6e:2x2x1
jax: 0.10.0
libtpu: 0.0.40
codegen_flags: <defaults>
</compile_context>

<pallas_src>
import jax
import jax.numpy as jnp
from jax.experimental import pallas as pl
from jax.experimental.pallas import tpu as pltpu


def _round_up(x, m):
    return (x + m - 1) // m * m


def _conv1d_gemm_kernel(x_ref, w_ref, o_ref):
    # x_ref: (M_TILE, K*C_in)    im2col rows for this tile
    # w_ref: (K*C_in, C_out_eff) resident weight (constant index_map)
    # o_ref: (M_TILE, C_out_eff)
    # Single MXU contraction; f32 accumulation, cast on store.
    o_ref[...] = jnp.dot(x_ref[...], w_ref[...],
                         preferred_element_type=jnp.float32).astype(o_ref.dtype)


def basic_conv1d(x_ncl, weight_oik, *, stride=1, padding=0, compute_dtype=None):
    """nn.Conv1d forward, bias=False.

    x_ncl:      (N, C_in, L)       PyTorch NCL layout
    weight_oik: (C_out, C_in, K)   PyTorch Conv1d weight layout
    returns:    (N, C_out, L_out)  with L_out = L + 2*padding - K + 1
    """
    assert stride == 1, "only stride=1 (nn.Conv1d default) is implemented"
    N, C_in, L = x_ncl.shape
    C_out, C_in_w, K = weight_oik.shape
    assert C_in == C_in_w
    L_padded = L + 2 * padding
    L_out = L_padded - K + 1
    assert L_out > 0
    out_dtype = x_ncl.dtype

    if compute_dtype is not None:
        # bf16 operands for the MXU fast path; accumulation stays f32 in-kernel.
        x_ncl = x_ncl.astype(compute_dtype)
        weight_oik = weight_oik.astype(compute_dtype)

    # ---- wrapper-side layout plumbing (XLA fuses these into one producer) --
    if padding:
        x_ncl = jnp.pad(x_ncl, ((0, 0), (0, 0), (padding, padding)))
    x_nlc = jnp.transpose(x_ncl, (0, 2, 1))                  # (N, L_pad, C_in)
    # im2col: column k*C_in + ci holds x[n, l + k, ci].
    x_col = jnp.concatenate([x_nlc[:, k:k + L_out, :] for k in range(K)],
                            axis=-1)                         # (N, L_out, K*C_in)
    KC = K * C_in
    M = N * L_out
    x_col = x_col.reshape(M, KC)

    # Weight -> (K*C_in, C_out) matching the im2col column order.
    w_mat = jnp.transpose(weight_oik, (2, 1, 0)).reshape(KC, C_out)

    # Lane padding only when the output is already >= 128 channels wide;
    # for small C_out the masked store beats inflating writeback 16x.
    if C_out >= 128 and C_out % 128 != 0:
        C_out_eff = _round_up(C_out, 128)
        w_mat = jnp.pad(w_mat, ((0, 0), (0, C_out_eff - C_out)))
    else:
        C_out_eff = C_out

    # M tiling: one tile for small problems; ~512-row tiles otherwise so the
    # "parallel" grid has several steps for v7x's two TensorCores.  Tiles are
    # small enough (<< scoped VMEM default on all generations) that we do not
    # need an explicit vmem_limit_bytes.
    num_tiles = pl.cdiv(M, 512)
    M_TILE = _round_up(pl.cdiv(M, num_tiles), 8)
    M_pad = M_TILE * num_tiles
    if M_pad != M:
        x_col = jnp.pad(x_col, ((0, M_pad - M), (0, 0)))

    itemsize = jnp.dtype(x_col.dtype).itemsize
    cost = pl.CostEstimate(
        flops=2 * M * KC * C_out,        # true C_out, not padded
        transcendentals=0,
        bytes_accessed=(M_pad * KC * itemsize
                        + KC * C_out_eff * itemsize
                        + M_pad * C_out_eff * jnp.dtype(out_dtype).itemsize))

    out = pl.pallas_call(
        _conv1d_gemm_kernel,
        out_shape=jax.ShapeDtypeStruct((M_pad, C_out_eff), out_dtype),
        grid_spec=pltpu.PrefetchScalarGridSpec(
            num_scalar_prefetch=0,
            grid=(num_tiles,),
            in_specs=[
                pl.BlockSpec((M_TILE, KC), lambda m: (m, 0)),
                # Constant index_map -> weight stays resident in VMEM.
                pl.BlockSpec((KC, C_out_eff), lambda m: (0, 0)),
            ],
            out_specs=pl.BlockSpec((M_TILE, C_out_eff), lambda m: (m, 0)),
        ),
        compiler_params=pltpu.CompilerParams(
            dimension_semantics=("parallel",)),
        cost_estimate=cost,
    )(x_col, w_mat)

    # ---- post-call layout (XLA fuses these into one consumer) --------------
    out = out[:M, :C_out].reshape(N, L_out, C_out)
    return jnp.transpose(out, (0, 2, 1))                     # (N, C_out, L_out)


if __name__ == "__main__":
    # Shapes consistent with BasicConv1d(in_channels=4, out_channels=8,
    # kernel_size=3) as used inside GaitPart.
    N, C_in, C_out, L, K = 2, 4, 8, 16, 3

    key = jax.random.PRNGKey(0)
    kx, kw = jax.random.split(key)
    x = jax.random.normal(kx, (N, C_in, L), dtype=jnp.float32)
    # Deterministic synthetic Conv1d weight, PyTorch layout (C_out, C_in, K).
    w = jax.random.normal(kw, (C_out, C_in, K), dtype=jnp.float32) * 0.1

    # Check both nn.Conv1d default (padding=0) and the padding=1 variant.
    for pad in (0, 1):
        ref = jax.lax.conv_general_dilated(
            x, w, window_strides=(1,), padding=[(pad, pad)],
            dimension_numbers=("NCH", "OIH", "NCH"))

        # Exact (f32 operand) path.
        out = jax.block_until_ready(basic_conv1d(x, w, padding=pad))
        assert out.shape == ref.shape, (out.shape, ref.shape)
        assert jnp.allclose(out, ref, atol=1e-5, rtol=1e-5), \
            f"f32 mismatch (padding={pad})"

        # bf16-operand / f32-accumulate path (MXU fast path on v5e/v6e/v7x).
        out_bf16 = jax.block_until_ready(
            basic_conv1d(x, w, padding=pad, compute_dtype=jnp.bfloat16))
        assert out_bf16.shape == ref.shape, (out_bf16.shape, ref.shape)
        assert jnp.allclose(out_bf16, ref, atol=5e-2, rtol=5e-2), \
            f"bf16 mismatch (padding={pad})"

    print("KERNEL_OK")
</pallas_src>

<mosaic_0001>
module attributes {stable_mosaic.version = 11 : i64} {
  func.func @_conv1d_gemm_kernel(%arg0: i32, %arg1: memref<32x12xf32, #tpu.memory_space<vmem>>, %arg2: memref<12x8xf32, #tpu.memory_space<vmem>>, %arg3: memref<32x8xf32, #tpu.memory_space<vmem>>) attributes {dimension_semantics = [#tpu.dimension_semantics<parallel>], iteration_bounds = array<i64: 1>, scalar_prefetch = 0 : i64, scratch_operands = 0 : i64, tpu.core_type = #tpu.core_type<tc>, window_params = [{transform_indices = @transform_0, window_bounds = array<i64: 32, 12>}, {pipeline_mode = #tpu.pipeline_mode<synchronous>, transform_indices = @transform_1, window_bounds = array<i64: 12, 8>}, {transform_indices = @transform_2, window_bounds = array<i64: 32, 8>}]} {
    %c0 = arith.constant 0 : index
    %c0_0 = arith.constant 0 : index
    %0 = vector.load %arg1[%c0, %c0_0] : memref<32x12xf32, #tpu.memory_space<vmem>>, vector<32x12xf32>
    %c0_1 = arith.constant 0 : index
    %c0_2 = arith.constant 0 : index
    %1 = vector.load %arg2[%c0_1, %c0_2] : memref<12x8xf32, #tpu.memory_space<vmem>>, vector<12x8xf32>
    %cst = arith.constant dense<0.000000e+00> : vector<32x8xf32>
    %2 = tpu.matmul %0, %1, %cst {dimension_numbers = #tpu.dot_dimension_numbers<[1], [0], [0], [1], [0, 0, 1, 1], [], []>} : vector<32x12xf32>, vector<12x8xf32>, vector<32x8xf32> -> vector<32x8xf32>
    %c0_3 = arith.constant 0 : index
    %c0_4 = arith.constant 0 : index
    %3 = vector.load %arg3[%c0_3, %c0_4] : memref<32x8xf32, #tpu.memory_space<vmem>>, vector<32x8xf32>
    tpu.vector_store %arg3[%c0_3, %c0_4], %2 {strides = array<i32>} : memref<32x8xf32, #tpu.memory_space<vmem>>, vector<32x8xf32>,
    return
  }
  func.func @transform_0(%arg0: i32) -> (i32, i32) {
    %c0_i32 = arith.constant 0 : i32
    %c0_i32_0 = arith.constant 0 : i32
    return %arg0, %c0_i32 : i32, i32
  }
  func.func @transform_1(%arg0: i32) -> (i32, i32) {
    %c0_i32 = arith.constant 0 : i32
    %c0_i32_0 = arith.constant 0 : i32
    %c0_i32_1 = arith.constant 0 : i32
    return %c0_i32, %c0_i32_0 : i32, i32
  }
  func.func @transform_2(%arg0: i32) -> (i32, i32) {
    %c0_i32 = arith.constant 0 : i32
    %c0_i32_0 = arith.constant 0 : i32
    return %arg0, %c0_i32 : i32, i32
  }
}

</mosaic_0001>

<llo_original>
// kernel: tpu_custom_call.1
$region0: #{tpu_custom_call.1}
  #allocation0 [shape = 'u32[]', space=smem, size = 0x4, offset = 0x4, fixed_abs, tag = 'smem constant byte address 0x4 - core index']
  #allocation1 [shape = 'u32[144,128]{1,0:T(1,128)}', space=vmem, size = 0x12000, scoped, tag = 'internal scratch']
  %s0 = inlined_call_operand.vmem [shape: f32[32,12], index: 0, kind: input, shape index: {}]
  %s1 = inlined_call_operand.vmem [shape: f32[12,8], index: 1, kind: input, shape index: {}]
  %s2 = inlined_call_operand.vmem [shape: f32[32,8], index: 2, kind: output, shape index: {}]
  %s3 = sld [smem:[#allocation0]]
  $region18: #{tpu_custom_call.1} parent=0
    _
  %s5 = ssub.s32 1, %s3
  %s6 = scalar_select 0, %s5, %s3
  // Predicated region
  $region2: #{tpu_custom_call.1} parent=0 // pred_check
    _
  $region3: #{tpu_custom_call.1} parent=0 // pred_check_branch
    %8 = sbr.rel (0) target = $region5
  $region4: #{tpu_custom_call.1} parent=0 // pred_region
    _
  $region5: #{tpu_custom_call.1} parent=0 // pred_fallthru
    _
  // Predicated region
  $region6: #{tpu_custom_call.1} parent=0 // pred_check
    _
  $region7: #{tpu_custom_call.1} parent=0 // pred_check_branch
    %10 = sbr.rel (0) target = $region9
  $region8: #{tpu_custom_call.1} parent=0 // pred_region
    _
  $region9: #{tpu_custom_call.1} parent=0 // pred_fallthru
    _
  %v11 = vld [vmem:[%s0] sm:$0xff]
  %v12 = vld [vmem:[%s0 + $0x8] sm:$0xff]
  %v13 = vld [vmem:[%s0 + $0x10] sm:$0xff]
  %v14 = vld [vmem:[%s0 + $0x18] sm:$0xff]
  %v15 = vld [vmem:[%s1] sm:$0xff]
  %v16 = vld [vmem:[%s1 + $0x8] sm:$0xf]
  %vm17 = vcmask 97280
  %v19 = vsel %vm17, %v11, 0
  %v22 = vsel %vm17, %v12, 0
  %v25 = vsel %vm17, %v13, 0
  %v28 = vsel %vm17, %v14, 0
  %vm30 = vcmask 1043456
  %v32 = vsel %vm30, %v16, 0
  %34 = vmatprep.subr.mxu0 0.0
  %35 = vmatpush1.msra.mxu0 0.0
  %36 = vmatprep.subr.mxu0 0.0
  %37 = vmatpush1.msra.mxu0 0.0
  %38 = vmatprep.subr.mxu0 0.0
  %39 = vmatpush1.msra.mxu0 0.0
  %40 = vmatprep.subr.mxu0 0.0
  %41 = vmatpush1.msra.mxu0 0.0
  %42 = vmatprep.subr.mxu0 0.0
  %43 = vmatpush1.msra.mxu0 0.0
  %44 = vmatprep.subr.mxu0 0.0
  %45 = vmatpush1.msra.mxu0 0.0
  %46 = vmatprep.subr.mxu0 0.0
  %47 = vmatpush1.msra.mxu0 0.0
  %48 = vmatprep.subr.mxu0 0.0
  %49 = vmatpush1.msra.mxu0 0.0
  %50 = vmatprep.subr.mxu0 0.0
  %51 = vmatpush1.msra.mxu0 0.0
  %52 = vmatprep.subr.mxu0 0.0
  %53 = vmatpush1.msra.mxu0 0.0
  %54 = vmatprep.subr.mxu0 0.0
  %55 = vmatpush1.msra.mxu0 0.0
  %56 = vmatprep.subr.mxu0 0.0
  %57 = vmatpush1.msra.mxu0 0.0
  %58 = vmatprep.subr.mxu0 0.0
  %59 = vmatpush1.msra.mxu0 0.0
  %60 = vmatprep.subr.mxu0 0.0
  %61 = vmatpush1.msra.mxu0 0.0
  %62 = vmatprep.subr.mxu0 0.0
  %63 = vmatpush1.msra.mxu0 %v32
  %64 = vmatprep.subr.mxu0 0.0
  %65 = vmatpush1.msra.mxu0 %v15
  %66 = vmatprep.subr.mxu0 0.0
  %67 = vmatpush2.msra.mxu0 0.0
  %68 = vmatprep.subr.mxu0 0.0
  %69 = vmatpush2.msra.mxu0 0.0
  %70 = vmatprep.subr.mxu0 0.0
  %71 = vmatpush2.msra.mxu0 0.0
  %72 = vmatprep.subr.mxu0 0.0
  %73 = vmatpush2.msra.mxu0 0.0
  %74 = vmatprep.subr.mxu0 0.0
  %75 = vmatpush2.msra.mxu0 0.0
  %76 = vmatprep.subr.mxu0 0.0
  %77 = vmatpush2.msra.mxu0 0.0
  %78 = vmatprep.subr.mxu0 0.0
  %79 = vmatpush2.msra.mxu0 0.0
  %80 = vmatprep.subr.mxu0 0.0
  %81 = vmatpush2.msra.mxu0 0.0
  %82 = vmatprep.subr.mxu0 0.0
  %83 = vmatpush2.msra.mxu0 0.0
  %84 = vmatprep.subr.mxu0 0.0
  %85 = vmatpush2.msra.mxu0 0.0
  %86 = vmatprep.subr.mxu0 0.0
  %87 = vmatpush2.msra.mxu0 0.0
  %88 = vmatprep.subr.mxu0 0.0
  %89 = vmatpush2.msra.mxu0 0.0
  %90 = vmatprep.subr.mxu0 0.0
  %91 = vmatpush2.msra.mxu0 0.0
  %92 = vmatprep.subr.mxu0 0.0
  %93 = vmatpush2.msra.mxu0 0.0
  %94 = vmatprep.subr.mxu0 0.0
  %95 = vmatpush2.msra.mxu0 0.0
  %96 = vmatprep.subr.mxu0 0.0
  %97 = vmatpush2.msra.mxu0 0.0
  %98 = vmatprep.mubr.f32.mxu0 0.0
  %99 = vmatmul.mubr.f32.gmra.mxu0 %v19
  %v100 = vpop.f32.mrf.mxu0
  %v101 = vadd.f32 0.0, %v100
  %v102 = vpop.f32.mrf.mxu0
  %103 = vmatprep.mubr.f32.mxu0 0.0
  %104 = vmatmul.mubr.f32.gmra.mxu0 %v22
  %v105 = vpop.f32.mrf.mxu0
  %v106 = vadd.f32 0.0, %v105
  %v107 = vpop.f32.mrf.mxu0
  %108 = vmatprep.mubr.f32.mxu0 0.0
  %109 = vmatmul.mubr.f32.gmra.mxu0 %v25
  %v110 = vpop.f32.mrf.mxu0
  %v111 = vadd.f32 0.0, %v110
  %v112 = vpop.f32.mrf.mxu0
  %113 = vmatprep.mubr.f32.mxu0 0.0
  %114 = vmatmul.mubr.f32.gmra.mxu0 %v28
  %v115 = vpop.f32.mrf.mxu0
  %v116 = vadd.f32 0.0, %v115
  %v117 = vpop.f32.mrf.mxu0
  %118 = vdwg.mxu0
  %vm119 = vcmask 64512
  %120 = vst.msk [vmem:[%s2] sm:$0xff] %vm119, %v101
  %121 = vst.msk [vmem:[%s2 + $0x8] sm:$0xff] %vm119, %v106
  %122 = vst.msk [vmem:[%s2 + $0x10] sm:$0xff] %vm119, %v111
  %123 = vst.msk [vmem:[%s2 + $0x18] sm:$0xff] %vm119, %v116
  // Predicated region
  $region10: #{tpu_custom_call.1} parent=0 // pred_check
    _
  $region11: #{tpu_custom_call.1} parent=0 // pred_check_branch
    %125 = sbr.rel (0) target = $region13
  $region12: #{tpu_custom_call.1} parent=0 // pred_region
    _
  $region13: #{tpu_custom_call.1} parent=0 // pred_fallthru
    _
  // Predicated region
  $region14: #{tpu_custom_call.1} parent=0 // pred_check
    _
  $region15: #{tpu_custom_call.1} parent=0 // pred_check_branch
    %127 = sbr.rel (0) target = $region17
  $region16: #{tpu_custom_call.1} parent=0 // pred_region
    _
  $region17: #{tpu_custom_call.1} parent=0 // pred_fallthru
    _

</llo_original>
